<compile_context>
chip_gen: v6e
topology: v6e:2x2x1
jax: 0.10.0
libtpu: 0.0.40
codegen_flags: <defaults>
</compile_context>

<pallas_src>
import functools

import jax
import jax.numpy as jnp
from jax.experimental import pallas as pl
from jax.experimental.pallas import tpu as pltpu


def _round_up(v, m):
    return (v + m - 1) // m * m


# ---------------------------------------------------------------------------
# Fused two-phase kernel: phase 0 = conv1 + relu into VMEM scratch, phase 1 = conv2.
# ---------------------------------------------------------------------------
def _gcn_two_phase_kernel(a_ref, x_ref, wr1_ref, wo1_ref, b1_ref,
                          wr2_ref, wo2_ref, b2_ref, o_ref, h_ref):
    phase = pl.program_id(0)
    i = pl.program_id(1)
    tm = a_ref.shape[0]
    row0 = pl.multiple_of(i * tm, tm)

    @pl.when(phase == 0)
    def _conv1():
        # aggregation: A[row tile, :] @ x   (bf16 x bf16 -> f32 accumulate)
        agg = jnp.dot(a_ref[...], x_ref[...], preferred_element_type=jnp.float32)
        h = jnp.dot(agg.astype(jnp.bfloat16), wr1_ref[...],
                    preferred_element_type=jnp.float32)
        h = h + jnp.dot(x_ref[pl.ds(row0, tm), :], wo1_ref[...],
                        preferred_element_type=jnp.float32)
        h = h + b1_ref[...]
        # dropout(p=0.6) is the identity in eval mode; then ReLU
        h = jnp.maximum(h, 0.0)
        h_ref[pl.ds(row0, tm), :] = h.astype(jnp.bfloat16)

    @pl.when(phase == 1)
    def _conv2():
        # aggregation over the full hidden activations kept in VMEM scratch
        agg = jnp.dot(a_ref[...], h_ref[...], preferred_element_type=jnp.float32)
        out = jnp.dot(agg.astype(jnp.bfloat16), wr2_ref[...],
                      preferred_element_type=jnp.float32)
        out = out + jnp.dot(h_ref[pl.ds(row0, tm), :], wo2_ref[...],
                            preferred_element_type=jnp.float32)
        out = out + b2_ref[...]
        o_ref[...] = out.astype(o_ref.dtype)


# ---------------------------------------------------------------------------
# One-time parameter packing (hoisted out of the per-forward jit path):
# zero-pad feature dims to lane-dense multiples of 128 and cast weights to bf16.
# ---------------------------------------------------------------------------
def prepare_params(params, nfeats, nhids):
    fp = _round_up(max(nfeats, 1), 128)
    hp = _round_up(max(nhids, 1), 128)

    def pad_w(w, rows, cols):
        return jnp.pad(w, ((0, rows - w.shape[0]),
                           (0, cols - w.shape[1]))).astype(jnp.bfloat16)

    def pad_b(b, cols):
        return jnp.pad(b, ((0, 0), (0, cols - b.shape[1]))).astype(jnp.float32)

    return {
        "w_rel1": pad_w(params["w_rel1"], fp, hp),
        "w_root1": pad_w(params["w_root1"], fp, hp),
        "b1": pad_b(params["b1"], hp),
        "w_rel2": pad_w(params["w_rel2"], hp, hp),
        "w_root2": pad_w(params["w_root2"], hp, hp),
        "b2": pad_b(params["b2"], hp),
    }


# ---------------------------------------------------------------------------
# Forward wrapper: pad node dim to the row-tile size, run one two-phase pallas_call.
# ---------------------------------------------------------------------------
@functools.partial(jax.jit, static_argnames=("nhids",))
def gcn_encoder_forward(x, adj, packed, *, nhids):
    n, nfeats = x.shape
    fp, hp = packed["w_rel1"].shape

    tm = min(256, _round_up(n, 16))        # node-row tile (16-aligned for bf16 packing)
    np_ = _round_up(n, tm)
    n_tiles = np_ // tm

    x_p = jnp.pad(x, ((0, np_ - n), (0, fp - nfeats))).astype(jnp.bfloat16)
    a_p = adj if adj.dtype == jnp.bfloat16 else adj.astype(jnp.bfloat16)
    if np_ != n:
        a_p = jnp.pad(a_p, ((0, np_ - n), (0, np_ - n)))

    # Explicit VMEM budget (double-buffered blocks + resident weights + h scratch).
    need = (2 * (tm * np_ * 2)             # adjacency row blocks (bf16, double buffered)
            + 2 * (np_ * fp * 2)           # x (bf16)
            + 4 * (fp * hp * 2)            # conv1 weights (bf16)
            + 4 * (hp * hp * 2)            # conv2 weights (bf16)
            + 8 * (hp * 4)                 # biases (f32)
            + 2 * (tm * hp * 4)            # output blocks (f32, double buffered)
            + np_ * hp * 2)                # persistent hidden scratch (bf16)
    vmem_limit = int(min(64 * 1024 * 1024, max(4 * 1024 * 1024, need + need // 2)))

    out_padded = pl.pallas_call(
        _gcn_two_phase_kernel,
        out_shape=jax.ShapeDtypeStruct((np_, hp), jnp.float32),
        grid_spec=pltpu.PrefetchScalarGridSpec(
            num_scalar_prefetch=0,
            grid=(2, n_tiles),
            in_specs=[
                pl.BlockSpec((tm, np_), lambda p, i: (i, 0)),   # A row blocks
                pl.BlockSpec((np_, fp), lambda p, i: (0, 0)),   # x (resident)
                pl.BlockSpec((fp, hp), lambda p, i: (0, 0)),    # W_rel1
                pl.BlockSpec((fp, hp), lambda p, i: (0, 0)),    # W_root1
                pl.BlockSpec((1, hp), lambda p, i: (0, 0)),     # b1
                pl.BlockSpec((hp, hp), lambda p, i: (0, 0)),    # W_rel2
                pl.BlockSpec((hp, hp), lambda p, i: (0, 0)),    # W_root2
                pl.BlockSpec((1, hp), lambda p, i: (0, 0)),     # b2
            ],
            # i * p -> block 0 (never written back) during phase 0, block i in phase 1.
            out_specs=pl.BlockSpec((tm, hp), lambda p, i: (i * p, 0)),
            scratch_shapes=[pltpu.VMEM((np_, hp), jnp.bfloat16)],   # persistent hidden h
        ),
        compiler_params=pltpu.CompilerParams(
            # phase axis is a true dependency; row axis shares the h scratch -> arbitrary
            dimension_semantics=("arbitrary", "arbitrary"),
            vmem_limit_bytes=vmem_limit,
        ),
    )(a_p, x_p, packed["w_rel1"], packed["w_root1"], packed["b1"],
      packed["w_rel2"], packed["w_root2"], packed["b2"])

    return out_padded[:n, :nhids]


# ---------------------------------------------------------------------------
# Parameter init (GraphConv parameter shapes, stored as (in, out)).
# ---------------------------------------------------------------------------
def init_params(key, nfeats, nhids):
    k1, k2, k3, k4, k5, k6 = jax.random.split(key, 6)

    def glorot(k, fan_in, fan_out):
        limit = jnp.sqrt(6.0 / (fan_in + fan_out))
        return jax.random.uniform(k, (fan_in, fan_out), jnp.float32, -limit, limit)

    return {
        "w_rel1": glorot(k1, nfeats, nhids),
        "w_root1": glorot(k2, nfeats, nhids),
        "b1": jax.random.uniform(k5, (1, nhids), jnp.float32, -0.1, 0.1),
        "w_rel2": glorot(k3, nhids, nhids),
        "w_root2": glorot(k4, nhids, nhids),
        "b2": jax.random.uniform(k6, (1, nhids), jnp.float32, -0.1, 0.1),
    }


def edge_index_to_dense_adj(edge_index, num_nodes, dtype=jnp.bfloat16):
    """edge_index: (2, E) int32, rows = (src, dst). A[dst, src] += 1 (sum aggregation).

    Built directly in bf16 (no separate cast pass): exact while per-(dst, src)
    edge multiplicity stays <= 256.
    """
    src, dst = edge_index[0], edge_index[1]
    adj = jnp.zeros((num_nodes, num_nodes), dtype)
    return adj.at[dst, src].add(1.0)


if __name__ == "__main__":
    N = 64       # nodes
    NFEATS = 16  # input feature dim
    NHIDS = 32   # hidden dim
    E = 128      # edges

    key = jax.random.PRNGKey(0)
    kx, ke, kp = jax.random.split(key, 3)

    x = jax.random.normal(kx, (N, NFEATS), jnp.float32)
    edge_index = jax.random.randint(ke, (2, E), 0, N, dtype=jnp.int32)
    adj = edge_index_to_dense_adj(edge_index, N)            # bf16 (exact small counts)

    params = init_params(kp, NFEATS, NHIDS)
    packed = prepare_params(params, NFEATS, NHIDS)          # hoisted out of per-step path

    out = gcn_encoder_forward(x, adj, packed, nhids=NHIDS)
    jax.block_until_ready(out)
    assert out.shape == (N, NHIDS)

    # Reference mirroring the kernel's bf16-operand / f32-accumulate casting exactly.
    def bf16_dot(a, b):
        return jnp.dot(a.astype(jnp.bfloat16), b.astype(jnp.bfloat16),
                       preferred_element_type=jnp.float32)

    a32 = adj.astype(jnp.float32)
    h_ref = (bf16_dot(bf16_dot(a32, x), params["w_rel1"])
             + bf16_dot(x, params["w_root1"]) + params["b1"])
    h_ref = jnp.maximum(h_ref, 0.0)
    out_ref = (bf16_dot(bf16_dot(a32, h_ref), params["w_rel2"])
               + bf16_dot(h_ref, params["w_root2"]) + params["b2"])
    assert jnp.allclose(out, out_ref, atol=2e-3, rtol=2e-3), \
        float(jnp.max(jnp.abs(out - out_ref)))

    # Loose sanity check against the exact f32 module math (bf16 operands round a bit).
    def conv(a, xx, wr, wo, b):
        return (a @ xx) @ wr + xx @ wo + b

    h32 = jnp.maximum(conv(a32, x, params["w_rel1"], params["w_root1"], params["b1"]), 0.0)
    out32 = conv(a32, h32, params["w_rel2"], params["w_root2"], params["b2"])
    assert jnp.allclose(out, out32, atol=0.5, rtol=0.1)

    print("KERNEL_OK")
</pallas_src>

<mosaic_0001>
module attributes {stable_mosaic.version = 11 : i64} {
  func.func @_gcn_two_phase_kernel(%arg0: i32, %arg1: i32, %arg2: memref<64x64xbf16, #tpu.memory_space<vmem>>, %arg3: memref<64x128xbf16, #tpu.memory_space<vmem>>, %arg4: memref<128x128xbf16, #tpu.memory_space<vmem>>, %arg5: memref<128x128xbf16, #tpu.memory_space<vmem>>, %arg6: memref<1x128xf32, #tpu.memory_space<vmem>>, %arg7: memref<128x128xbf16, #tpu.memory_space<vmem>>, %arg8: memref<128x128xbf16, #tpu.memory_space<vmem>>, %arg9: memref<1x128xf32, #tpu.memory_space<vmem>>, %arg10: memref<64x128xf32, #tpu.memory_space<vmem>>, %arg11: memref<64x128xbf16, #tpu.memory_space<vmem>>) attributes {dimension_semantics = [#tpu.dimension_semantics<arbitrary>, #tpu.dimension_semantics<arbitrary>], iteration_bounds = array<i64: 2, 1>, scalar_prefetch = 0 : i64, scratch_operands = 1 : i64, tpu.core_type = #tpu.core_type<tc>, window_params = [{transform_indices = @transform_0, window_bounds = array<i64: 64, 64>}, {pipeline_mode = #tpu.pipeline_mode<synchronous>, transform_indices = @transform_1, window_bounds = array<i64: 64, 128>}, {pipeline_mode = #tpu.pipeline_mode<synchronous>, transform_indices = @transform_2, window_bounds = array<i64: 128, 128>}, {pipeline_mode = #tpu.pipeline_mode<synchronous>, transform_indices = @transform_3, window_bounds = array<i64: 128, 128>}, {pipeline_mode = #tpu.pipeline_mode<synchronous>, transform_indices = @transform_4, window_bounds = array<i64: 1, 128>}, {pipeline_mode = #tpu.pipeline_mode<synchronous>, transform_indices = @transform_5, window_bounds = array<i64: 128, 128>}, {pipeline_mode = #tpu.pipeline_mode<synchronous>, transform_indices = @transform_6, window_bounds = array<i64: 128, 128>}, {pipeline_mode = #tpu.pipeline_mode<synchronous>, transform_indices = @transform_7, window_bounds = array<i64: 1, 128>}, {transform_indices = @transform_8, window_bounds = array<i64: 64, 128>}]} {
    %c64_i32 = arith.constant 64 : i32
    %0 = arith.muli %arg1, %c64_i32 : i32
    %1 = tpu.assume_multiple %0, 64 : i32
    %c0_i32 = arith.constant 0 : i32
    %2 = arith.cmpi eq, %arg0, %c0_i32 : i32
    %3 = arith.extui %2 : i1 to i32
    %c0_i32_0 = arith.constant 0 : i32
    %4 = arith.cmpi ne, %3, %c0_i32_0 : i32
    scf.if %4 {
      %c0 = arith.constant 0 : index
      %c0_2 = arith.constant 0 : index
      %8 = vector.load %arg2[%c0, %c0_2] : memref<64x64xbf16, #tpu.memory_space<vmem>>, vector<64x64xbf16>
      %c0_3 = arith.constant 0 : index
      %c0_4 = arith.constant 0 : index
      %9 = vector.load %arg3[%c0_3, %c0_4] : memref<64x128xbf16, #tpu.memory_space<vmem>>, vector<64x128xbf16>
      %cst = arith.constant dense<0.000000e+00> : vector<64x128xf32>
      %10 = tpu.matmul %8, %9, %cst {dimension_numbers = #tpu.dot_dimension_numbers<[1], [0], [0], [1], [0, 0, 1, 1], [], []>} : vector<64x64xbf16>, vector<64x128xbf16>, vector<64x128xf32> -> vector<64x128xf32>
      %11 = arith.truncf %10 : vector<64x128xf32> to vector<64x128xbf16>
      %c0_5 = arith.constant 0 : index
      %c0_6 = arith.constant 0 : index
      %12 = vector.load %arg4[%c0_5, %c0_6] : memref<128x128xbf16, #tpu.memory_space<vmem>>, vector<128x128xbf16>
      %cst_7 = arith.constant dense<0.000000e+00> : vector<64x128xf32>
      %13 = tpu.matmul %11, %12, %cst_7 {dimension_numbers = #tpu.dot_dimension_numbers<[1], [0], [0], [1], [0, 0, 1, 1], [], []>} : vector<64x128xbf16>, vector<128x128xbf16>, vector<64x128xf32> -> vector<64x128xf32>
      %14 = arith.index_cast %1 : i32 to index
      %c0_8 = arith.constant 0 : index
      %15 = vector.load %arg3[%14, %c0_8] : memref<64x128xbf16, #tpu.memory_space<vmem>>, vector<64x128xbf16>
      %c0_9 = arith.constant 0 : index
      %c0_10 = arith.constant 0 : index
      %16 = vector.load %arg5[%c0_9, %c0_10] : memref<128x128xbf16, #tpu.memory_space<vmem>>, vector<128x128xbf16>
      %cst_11 = arith.constant dense<0.000000e+00> : vector<64x128xf32>
      %17 = tpu.matmul %15, %16, %cst_11 {dimension_numbers = #tpu.dot_dimension_numbers<[1], [0], [0], [1], [0, 0, 1, 1], [], []>} : vector<64x128xbf16>, vector<128x128xbf16>, vector<64x128xf32> -> vector<64x128xf32>
      %18 = arith.addf %13, %17 : vector<64x128xf32>
      %c0_12 = arith.constant 0 : index
      %c0_13 = arith.constant 0 : index
      %19 = vector.load %arg6[%c0_12, %c0_13] : memref<1x128xf32, #tpu.memory_space<vmem>>, vector<1x128xf32>
      %20 = vector.broadcast %19 : vector<1x128xf32> to vector<64x128xf32>
      %21 = arith.addf %18, %20 : vector<64x128xf32>
      %cst_14 = arith.constant 0.000000e+00 : f32
      %22 = vector.broadcast %cst_14 : f32 to vector<64x128xf32>
      %23 = arith.maximumf %21, %22 : vector<64x128xf32>
      %24 = arith.truncf %23 : vector<64x128xf32> to vector<64x128xbf16>
      %25 = arith.index_cast %1 : i32 to index
      %c0_15 = arith.constant 0 : index
      %26 = vector.load %arg11[%25, %c0_15] : memref<64x128xbf16, #tpu.memory_space<vmem>>, vector<64x128xbf16>
      tpu.vector_store %arg11[%25, %c0_15], %24 {strides = array<i32>} : memref<64x128xbf16, #tpu.memory_space<vmem>>, vector<64x128xbf16>,
    } else {
    }
    %c1_i32 = arith.constant 1 : i32
    %5 = arith.cmpi eq, %arg0, %c1_i32 : i32
    %6 = arith.extui %5 : i1 to i32
    %c0_i32_1 = arith.constant 0 : i32
    %7 = arith.cmpi ne, %6, %c0_i32_1 : i32
    scf.if %7 {
      %c0 = arith.constant 0 : index
      %c0_2 = arith.constant 0 : index
      %8 = vector.load %arg2[%c0, %c0_2] : memref<64x64xbf16, #tpu.memory_space<vmem>>, vector<64x64xbf16>
      %c0_3 = arith.constant 0 : index
      %c0_4 = arith.constant 0 : index
      %9 = vector.load %arg11[%c0_3, %c0_4] : memref<64x128xbf16, #tpu.memory_space<vmem>>, vector<64x128xbf16>
      %cst = arith.constant dense<0.000000e+00> : vector<64x128xf32>
      %10 = tpu.matmul %8, %9, %cst {dimension_numbers = #tpu.dot_dimension_numbers<[1], [0], [0], [1], [0, 0, 1, 1], [], []>} : vector<64x64xbf16>, vector<64x128xbf16>, vector<64x128xf32> -> vector<64x128xf32>
      %11 = arith.truncf %10 : vector<64x128xf32> to vector<64x128xbf16>
      %c0_5 = arith.constant 0 : index
      %c0_6 = arith.constant 0 : index
      %12 = vector.load %arg7[%c0_5, %c0_6] : memref<128x128xbf16, #tpu.memory_space<vmem>>, vector<128x128xbf16>
      %cst_7 = arith.constant dense<0.000000e+00> : vector<64x128xf32>
      %13 = tpu.matmul %11, %12, %cst_7 {dimension_numbers = #tpu.dot_dimension_numbers<[1], [0], [0], [1], [0, 0, 1, 1], [], []>} : vector<64x128xbf16>, vector<128x128xbf16>, vector<64x128xf32> -> vector<64x128xf32>
      %14 = arith.index_cast %1 : i32 to index
      %c0_8 = arith.constant 0 : index
      %15 = vector.load %arg11[%14, %c0_8] : memref<64x128xbf16, #tpu.memory_space<vmem>>, vector<64x128xbf16>
      %c0_9 = arith.constant 0 : index
      %c0_10 = arith.constant 0 : index
      %16 = vector.load %arg8[%c0_9, %c0_10] : memref<128x128xbf16, #tpu.memory_space<vmem>>, vector<128x128xbf16>
      %cst_11 = arith.constant dense<0.000000e+00> : vector<64x128xf32>
      %17 = tpu.matmul %15, %16, %cst_11 {dimension_numbers = #tpu.dot_dimension_numbers<[1], [0], [0], [1], [0, 0, 1, 1], [], []>} : vector<64x128xbf16>, vector<128x128xbf16>, vector<64x128xf32> -> vector<64x128xf32>
      %18 = arith.addf %13, %17 : vector<64x128xf32>
      %c0_12 = arith.constant 0 : index
      %c0_13 = arith.constant 0 : index
      %19 = vector.load %arg9[%c0_12, %c0_13] : memref<1x128xf32, #tpu.memory_space<vmem>>, vector<1x128xf32>
      %20 = vector.broadcast %19 : vector<1x128xf32> to vector<64x128xf32>
      %21 = arith.addf %18, %20 : vector<64x128xf32>
      %c0_14 = arith.constant 0 : index
      %c0_15 = arith.constant 0 : index
      %22 = vector.load %arg10[%c0_14, %c0_15] : memref<64x128xf32, #tpu.memory_space<vmem>>, vector<64x128xf32>
      tpu.vector_store %arg10[%c0_14, %c0_15], %21 {strides = array<i32>} : memref<64x128xf32, #tpu.memory_space<vmem>>, vector<64x128xf32>,
    } else {
    }
    return
  }
  func.func @transform_0(%arg0: i32, %arg1: i32) -> (i32, i32) {
    %c0_i32 = arith.constant 0 : i32
    %c0_i32_0 = arith.constant 0 : i32
    return %arg1, %c0_i32 : i32, i32
  }
  func.func @transform_1(%arg0: i32, %arg1: i32) -> (i32, i32) {
    %c0_i32 = arith.constant 0 : i32
    %c0_i32_0 = arith.constant 0 : i32
    %c0_i32_1 = arith.constant 0 : i32
    return %c0_i32, %c0_i32_0 : i32, i32
  }
  func.func @transform_2(%arg0: i32, %arg1: i32) -> (i32, i32) {
    %c0_i32 = arith.constant 0 : i32
    %c0_i32_0 = arith.constant 0 : i32
    %c0_i32_1 = arith.constant 0 : i32
    return %c0_i32, %c0_i32_0 : i32, i32
  }
  func.func @transform_3(%arg0: i32, %arg1: i32) -> (i32, i32) {
    %c0_i32 = arith.constant 0 : i32
    %c0_i32_0 = arith.constant 0 : i32
    %c0_i32_1 = arith.constant 0 : i32
    return %c0_i32, %c0_i32_0 : i32, i32
  }
  func.func @transform_4(%arg0: i32, %arg1: i32) -> (i32, i32) {
    %c0_i32 = arith.constant 0 : i32
    %c0_i32_0 = arith.constant 0 : i32
    %c0_i32_1 = arith.constant 0 : i32
    return %c0_i32, %c0_i32_0 : i32, i32
  }
  func.func @transform_5(%arg0: i32, %arg1: i32) -> (i32, i32) {
    %c0_i32 = arith.constant 0 : i32
    %c0_i32_0 = arith.constant 0 : i32
    %c0_i32_1 = arith.constant 0 : i32
    return %c0_i32, %c0_i32_0 : i32, i32
  }
  func.func @transform_6(%arg0: i32, %arg1: i32) -> (i32, i32) {
    %c0_i32 = arith.constant 0 : i32
    %c0_i32_0 = arith.constant 0 : i32
    %c0_i32_1 = arith.constant 0 : i32
    return %c0_i32, %c0_i32_0 : i32, i32
  }
  func.func @transform_7(%arg0: i32, %arg1: i32) -> (i32, i32) {
    %c0_i32 = arith.constant 0 : i32
    %c0_i32_0 = arith.constant 0 : i32
    %c0_i32_1 = arith.constant 0 : i32
    return %c0_i32, %c0_i32_0 : i32, i32
  }
  func.func @transform_8(%arg0: i32, %arg1: i32) -> (i32, i32) {
    %0 = arith.muli %arg1, %arg0 : i32
    %c0_i32 = arith.constant 0 : i32
    %c0_i32_0 = arith.constant 0 : i32
    return %0, %c0_i32 : i32, i32
  }
}

</mosaic_0001>

<llo_original>
// kernel: gcn_encoder_forward.1
$region0: #{gcn_encoder_forward.1}
  #allocation0 [shape = 'u32[]', space=smem, size = 0x4, offset = 0x4, fixed_abs, tag = 'smem constant byte address 0x4 - core index']
  #allocation1 [shape = 'u32[144,128]{1,0:T(1,128)}', space=vmem, size = 0x12000, scoped, tag = 'internal scratch']
  #allocation2 [shape = 'bf16[64,128]{1,0:T(8,128)(2,1)}', space=vmem, size = 0x4000, scoped, tag = 'scratch operand']
  %s0 = inlined_call_operand.hbm [shape: bf16[64,64], index: 0, kind: input, shape index: {}]
  %s1 = inlined_call_operand.vmem [shape: bf16[64,128], index: 1, kind: input, shape index: {}]
  %s2 = inlined_call_operand.vmem [shape: bf16[128,128], index: 2, kind: input, shape index: {}]
  %s3 = inlined_call_operand.vmem [shape: bf16[128,128], index: 3, kind: input, shape index: {}]
  %s4 = inlined_call_operand.vmem [shape: f32[1,128], index: 4, kind: input, shape index: {}]
  %s5 = inlined_call_operand.hbm [shape: bf16[128,128], index: 5, kind: input, shape index: {}]
  %s6 = inlined_call_operand.hbm [shape: bf16[128,128], index: 6, kind: input, shape index: {}]
  %s7 = inlined_call_operand.vmem [shape: f32[1,128], index: 7, kind: input, shape index: {}]
  %s8 = inlined_call_operand.vmem [shape: f32[64,128], index: 8, kind: output, shape index: {}]
  %s9 = sld [smem:[#allocation0]]
  $region85: #{gcn_encoder_forward.1} parent=0
    _
  %s11 = ssub.s32 1, %s9
  %s12 = scalar_select 0, %s11, %s9
  $region1: #{gcn_encoder_forward.1} parent=0
    #allocation3 [shape = 'u8[16384]{0}', space=vmem, size = 0x4000, scoped, tag = 'input window, operand 0, single buffered']
    #allocation4 [shape = 's32[2]{0}', space=sflag, size = 0x8, scoped, tag = 'scoped memory for gcn_encoder_forward.1']
    #allocation5 [shape = 'u8[32768]{0}', space=vmem, size = 0x8000, scoped, tag = 'input window, operand 5, single buffered']
    #allocation6 [shape = 's32[1]{0}', space=sflag, size = 0x4, scoped, tag = 'scoped memory for gcn_encoder_forward.1']
    #allocation7 [shape = 'u8[32768]{0}', space=vmem, size = 0x8000, scoped, tag = 'input window, operand 6, single buffered']
    %13 = vsyncpa [#allocation4], 0
    %14 = vsyncpa [#allocation6], 0
    loop: start=0, step=1, limit=4
    $region2: #{gcn_encoder_forward.1} parent=1 // loop_pre_header
      _
    $region3: #{gcn_encoder_forward.1} parent=1 // loop_header
      %s16 = sphi 0, %s20
      %p17 = scmp.ge.s32.totalorder %s16, 4
      %s23 = sphi 0, %s35
      %s24 = sphi 0, %s31
      %s25 = sphi 0, %s23
      %s26 = sphi 0, %s24
      %s27 = sphi 0, %s25
      %s28 = sphi 0, %s26
      %s38 = sphi 0, %s40
      %s41 = sphi 0, %s38
      %s42 = sphi 0, %s41
      %s58 = sphi 0, %s42
      %s62 = sphi 0, %s62
      %s64 = sphi 0, %s62
      %s65 = sphi 0, %s64
      %s79 = sphi 0, %s65
      %s83 = sphi 0, %s83
      %s85 = sphi 0, %s83
      %s86 = sphi 0, %s85
      %s100 = sphi 0, %s86
      %s104 = sphi 0, %s104
      %s106 = sphi 0, %s104
      %s107 = sphi 0, %s106
      %s121 = sphi 0, %s107
      %s125 = sphi 0, %s125
      %s127 = sphi 0, %s125
      %s128 = sphi 0, %s127
      %s142 = sphi 0, %s128
      %s146 = sphi 0, %s146
      %s148 = sphi 0, %s146
      %s149 = sphi 0, %s148
      %s163 = sphi 0, %s149
      %s167 = sphi 0, %s167
      %s169 = sphi 0, %s167
      %s170 = sphi 0, %s169
      %s184 = sphi 0, %s170
      %s188 = sphi 0, %s188
      %s190 = sphi 0, %s188
      %s191 = sphi 0, %s190
      %s205 = sphi 0, %s191
      %s213 = sphi 0, %s215
      %s216 = sphi 0, %s213
      %s217 = sphi 0, %s216
      %s233 = sphi 0, %s217
    $region4: #{gcn_encoder_forward.1} parent=1 // loop_header_branch
      %19 = sbr.rel (%p17) target = $region8
    $region5: #{gcn_encoder_forward.1} parent=1 // loop_body
      %s21 = ssub.s32 %s16, 1
      %s22 = ssub.s32 %s16, 2
      %s29 = sadd.s32 1, %s24
      %p30 = scmp.ge.s32.totalorder %s29, 1
      %s31 = scalar_select %p30, 0, %s29
      %s32 = sadd.s32 1, %s23
      %s33 = scalar_select %p30, %s32, %s23
      %p34 = scmp.ge.s32.totalorder %s33, 2
      %s35 = scalar_select %p34, 0, %s33
      %s36 = ssub.s32 %s24, %s31
      %p37 = scmp.eq.s32.totalorder %s36, 0
      %s39 = sadd.s32 %s38, 1
      %s40 = scalar_select %p37, %s38, %s39
      %p43 = pneg %p37
      %p44 = scmp.eq.s32.totalorder %s16, 1
      %p45 = por %p43, %p44
      %p46 = scmp.ne.s32.totalorder %s38, %s41
      %p47 = scmp.eq.s32.totalorder %s16, 0
      %p48 = por %p46, %p47
      %p49 = scmp.ne.s32.totalorder %s38, %s41
      %p50 = scmp.eq.s32.totalorder %s21, 1
      %p51 = por %p49, %p50
      %p52 = scmp.ne.s32.totalorder %s41, %s42
      %p53 = scmp.eq.s32.totalorder %s21, 0
      %p54 = por %p52, %p53
      %p55 = scmp.ne.s32.totalorder %s41, %s42
      %p56 = scmp.eq.s32.totalorder %s22, 1
      %p57 = por %p55, %p56
      %p59 = scmp.ne.s32.totalorder %s42, %s58
      %p60 = scmp.eq.s32.totalorder %s22, 0
      %p61 = por %p59, %p60
      %s63 = sadd.s32 %s62, 1
      %p66 = scmp.eq.s32.totalorder %s16, 1
      %p67 = scmp.ne.s32.totalorder %s62, %s64
      %p68 = scmp.eq.s32.totalorder %s16, 0
      %p69 = por %p67, %p68
      %p70 = scmp.ne.s32.totalorder %s62, %s64
      %p71 = scmp.eq.s32.totalorder %s21, 1
      %p72 = por %p70, %p71
      %p73 = scmp.ne.s32.totalorder %s64, %s65
      %p74 = scmp.eq.s32.totalorder %s21, 0
      %p75 = por %p73, %p74
      %p76 = scmp.ne.s32.totalorder %s64, %s65
      %p77 = scmp.eq.s32.totalorder %s22, 1
      %p78 = por %p76, %p77
      %p80 = scmp.ne.s32.totalorder %s65, %s79
      %p81 = scmp.eq.s32.totalorder %s22, 0
      %p82 = por %p80, %p81
      %s84 = sadd.s32 %s83, 1
      %p87 = scmp.eq.s32.totalorder %s16, 1
      %p88 = scmp.ne.s32.totalorder %s83, %s85
      %p89 = scmp.eq.s32.totalorder %s16, 0
      %p90 = por %p88, %p89
      %p91 = scmp.ne.s32.totalorder %s83, %s85
      %p92 = scmp.eq.s32.totalorder %s21, 1
      %p93 = por %p91, %p92
      %p94 = scmp.ne.s32.totalorder %s85, %s86
      %p95 = scmp.eq.s32.totalorder %s21, 0
      %p96 = por %p94, %p95
      %p97 = scmp.ne.s32.totalorder %s85, %s86
      %p98 = scmp.eq.s32.totalorder %s22, 1
      %p99 = por %p97, %p98
      %p101 = scmp.ne.s32.totalorder %s86, %s100
      %p102 = scmp.eq.s32.totalorder %s22, 0
      %p103 = por %p101, %p102
      %s105 = sadd.s32 %s104, 1
      %p108 = scmp.eq.s32.totalorder %s16, 1
      %p109 = scmp.ne.s32.totalorder %s104, %s106
      %p110 = scmp.eq.s32.totalorder %s16, 0
      %p111 = por %p109, %p110
      %p112 = scmp.ne.s32.totalorder %s104, %s106
      %p113 = scmp.eq.s32.totalorder %s21, 1
      %p114 = por %p112, %p113
      %p115 = scmp.ne.s32.totalorder %s106, %s107
      %p116 = scmp.eq.s32.totalorder %s21, 0
      %p117 = por %p115, %p116
      %p118 = scmp.ne.s32.totalorder %s106, %s107
      %p119 = scmp.eq.s32.totalorder %s22, 1
      %p120 = por %p118, %p119
      %p122 = scmp.ne.s32.totalorder %s107, %s121
      %p123 = scmp.eq.s32.totalorder %s22, 0
      %p124 = por %p122, %p123
      %s126 = sadd.s32 %s125, 1
      %p129 = scmp.eq.s32.totalorder %s16, 1
      %p130 = scmp.ne.s32.totalorder %s125, %s127
      %p131 = scmp.eq.s32.totalorder %s16, 0
      %p132 = por %p130, %p131
      %p133 = scmp.ne.s32.totalorder %s125, %s127
      %p134 = scmp.eq.s32.totalorder %s21, 1
      %p135 = por %p133, %p134
      %p136 = scmp.ne.s32.totalorder %s127, %s128
      %p137 = scmp.eq.s32.totalorder %s21, 0
      %p138 = por %p136, %p137
      %p139 = scmp.ne.s32.totalorder %s127, %s128
      %p140 = scmp.eq.s32.totalorder %s22, 1
      %p141 = por %p139, %p140
      %p143 = scmp.ne.s32.totalorder %s128, %s142
      %p144 = scmp.eq.s32.totalorder %s22, 0
      %p145 = por %p143, %p144
      %s147 = sadd.s32 %s146, 1
      %p150 = scmp.eq.s32.totalorder %s16, 1
      %p151 = scmp.ne.s32.totalorder %s146, %s148
      %p152 = scmp.eq.s32.totalorder %s16, 0
      %p153 = por %p151, %p152
      %p154 = scmp.ne.s32.totalorder %s146, %s148
      %p155 = scmp.eq.s32.totalorder %s21, 1
      %p156 = por %p154, %p155
      %p157 = scmp.ne.s32.totalorder %s148, %s149
      %p158 = scmp.eq.s32.totalorder %s21, 0
      %p159 = por %p157, %p158
      %p160 = scmp.ne.s32.totalorder %s148, %s149
      %p161 = scmp.eq.s32.totalorder %s22, 1
      %p162 = por %p160, %p161
      %p164 = scmp.ne.s32.totalorder %s149, %s163
      %p165 = scmp.eq.s32.totalorder %s22, 0
      %p166 = por %p164, %p165
      %s168 = sadd.s32 %s167, 1
      %p171 = scmp.eq.s32.totalorder %s16, 1
      %p172 = scmp.ne.s32.totalorder %s167, %s169
      %p173 = scmp.eq.s32.totalorder %s16, 0
      %p174 = por %p172, %p173
      %p175 = scmp.ne.s32.totalorder %s167, %s169
      %p176 = scmp.eq.s32.totalorder %s21, 1
      %p177 = por %p175, %p176
      %p178 = scmp.ne.s32.totalorder %s169, %s170
      %p179 = scmp.eq.s32.totalorder %s21, 0
      %p180 = por %p178, %p179
      %p181 = scmp.ne.s32.totalorder %s169, %s170
      %p182 = scmp.eq.s32.totalorder %s22, 1
      %p183 = por %p181, %p182
      %p185 = scmp.ne.s32.totalorder %s170, %s184
      %p186 = scmp.eq.s32.totalorder %s22, 0
      %p187 = por %p185, %p186
      %s189 = sadd.s32 %s188, 1
      %p192 = scmp.eq.s32.totalorder %s16, 1
      %p193 = scmp.ne.s32.totalorder %s188, %s190
      %p194 = scmp.eq.s32.totalorder %s16, 0
      %p195 = por %p193, %p194
      %p196 = scmp.ne.s32.totalorder %s188, %s190
      %p197 = scmp.eq.s32.totalorder %s21, 1
      %p198 = por %p196, %p197
      %p199 = scmp.ne.s32.totalorder %s190, %s191
      %p200 = scmp.eq.s32.totalorder %s21, 0
      %p201 = por %p199, %p200
      %p202 = scmp.ne.s32.totalorder %s190, %s191
      %p203 = scmp.eq.s32.totalorder %s22, 1
      %p204 = por %p202, %p203
      %p206 = scmp.ne.s32.totalorder %s191, %s205
      %p207 = scmp.eq.s32.totalorder %s22, 0
      %p208 = por %p206, %p207
      %s209 = smul.u32 %s24, %s23
      %s210 = smul.u32 %s31, %s35
      %s211 = ssub.s32 %s209, %s210
      %p212 = scmp.eq.s32.totalorder %s211, 0
      %s214 = sadd.s32 %s213, 1
      %s215 = scalar_select %p212, %s213, %s214
      %p218 = pneg %p212
      %p219 = scmp.eq.s32.totalorder %s16, 1
      %p220 = por %p218, %p219
      %p221 = scmp.ne.s32.totalorder %s213, %s216
      %p222 = scmp.eq.s32.totalorder %s16, 0
      %p223 = por %p221, %p222
      %p224 = scmp.ne.s32.totalorder %s213, %s216
      %p225 = scmp.eq.s32.totalorder %s21, 1
      %p226 = por %p224, %p225
      %p227 = scmp.ne.s32.totalorder %s216, %s217
      %p228 = scmp.eq.s32.totalorder %s21, 0
      %p229 = por %p227, %p228
      %p230 = scmp.ne.s32.totalorder %s216, %s217
      %p231 = scmp.eq.s32.totalorder %s22, 1
      %p232 = por %p230, %p231
      %p234 = scmp.ne.s32.totalorder %s217, %s233
      %p235 = scmp.eq.s32.totalorder %s22, 0
      %p236 = por %p234, %p235
      %p237 = scmp.le.s32.totalorder 1, %s16
      %p238 = scmp.lt.s32.totalorder %s16, 3
      %p239 = pnand %p237, %p238
      %p240 = pneg %p239
      // Predicated region
      $region9: #{gcn_encoder_forward.1} parent=5 // pred_check
        _
      $region10: #{gcn_encoder_forward.1} parent=5 // pred_check_branch
        %242 = sbr.rel (%p239) target = $region12
      $region11: #{gcn_encoder_forward.1} parent=5 // pred_region
        %s243 = ssub.s32 %s16, 1
        // Predicated region
        $region13: #{gcn_encoder_forward.1} parent=11 // pred_check
          %p244 = pneg %p54
        $region14: #{gcn_encoder_forward.1} parent=11 // pred_check_branch
          %246 = sbr.rel (%p244) target = $region16
        $region15: #{gcn_encoder_forward.1} parent=11 // pred_region
          %s247 = smul.u32 8, %s26
          %s249 = ssub.s32 512, 512
          %250 = vsyncadd [#allocation4], %s249
          %s251 = smul.addr %s247, 64
          %s252 = scalar_lea.hbm %s0, %s251
          %s253 = sshll.u32 [#allocation3], 4
          %s254 = int_to_ptr.vmem [resolvable:$true] %s253
          %259 = dma.hbm_to_vmem [thread:$0]  %s252, 512, %s254, [#allocation4], 64, 64, 4
        $region16: #{gcn_encoder_forward.1} parent=11 // pred_fallthru
          _
        // Predicated region
        $region17: #{gcn_encoder_forward.1} parent=11 // pred_check
          %p260 = pneg %p75
        $region18: #{gcn_encoder_forward.1} parent=11 // pred_check_branch
          %262 = sbr.rel (%p260) target = $region20
        $region19: #{gcn_encoder_forward.1} parent=11 // pred_region
          _
        $region20: #{gcn_encoder_forward.1} parent=11 // pred_fallthru
          _
        // Predicated region
        $region21: #{gcn_encoder_forward.1} parent=11 // pred_check
          %p263 = pneg %p96
        $region22: #{gcn_encoder_forward.1} parent=11 // pred_check_branch
          %265 = sbr.rel (%p263) target = $region24
        $region23: #{gcn_encoder_forward.1} parent=11 // pred_region
          _
        $region24: #{gcn_encoder_forward.1} parent=11 // pred_fallthru
          _
        // Predicated region
        $region25: #{gcn_encoder_forward.1} parent=11 // pred_check
          %p266 = pneg %p117
        $region26: #{gcn_encoder_forward.1} parent=11 // pred_check_branch
          %268 = sbr.rel (%p266) target = $region28
        $region27: #{gcn_encoder_forward.1} parent=11 // pred_region
          _
        $region28: #{gcn_encoder_forward.1} parent=11 // pred_fallthru
          _
        // Predicated region
        $region29: #{gcn_encoder_forward.1} parent=11 // pred_check
          %p269 = pneg %p138
        $region30: #{gcn_encoder_forward.1} parent=11 // pred_check_branch
          %271 = sbr.rel (%p269) target = $region32
        $region31: #{gcn_encoder_forward.1} parent=11 // pred_region
          _
        $region32: #{gcn_encoder_forward.1} parent=11 // pred_fallthru
          _
        // Predicated region
        $region33: #{gcn_encoder_forward.1} parent=11 // pred_check
          %p272 = pneg %p159
        $region34: #{gcn_encoder_forward.1} parent=11 // pred_check_branch
          %274 = sbr.rel (%p272) target = $region36
        $region35: #{gcn_encoder_forward.1} parent=11 // pred_region
          %s276 = ssub.s32 1024, 1024
          %277 = vsyncadd [#allocation6], %s276
          %s278 = sshll.u32 [#allocation5], 4
          %s279 = int_to_ptr.vmem [resolvable:$true] %s278
          %284 = dma.hbm_to_vmem [thread:$0]  %s5, 1024, %s279, [#allocation6], 64, 64, 4
        $region36: #{gcn_encoder_forward.1} parent=11 // pred_fallthru
          _
        // Predicated region
        $region37: #{gcn_encoder_forward.1} parent=11 // pred_check
          %p285 = pneg %p180
        $region38: #{gcn_encoder_forward.1} parent=11 // pred_check_branch
          %287 = sbr.rel (%p285) target = $region40
        $region39: #{gcn_encoder_forward.1} parent=11 // pred_region
          %s289 = ssub.s32 1024, 1024
          %290 = vsyncadd [#allocation6], %s289
          %s291 = sshll.u32 [#allocation7], 4
          %s292 = int_to_ptr.vmem [resolvable:$true] %s291
          %297 = dma.hbm_to_vmem [thread:$0]  %s6, 1024, %s292, [#allocation6], 64, 64, 4
        $region40: #{gcn_encoder_forward.1} parent=11 // pred_fallthru
          _
        // Predicated region
        $region41: #{gcn_encoder_forward.1} parent=11 // pred_check
          %p298 = pneg %p201
        $region42: #{gcn_encoder_forward.1} parent=11 // pred_check_branch
          %300 = sbr.rel (%p298) target = $region44
        $region43: #{gcn_encoder_forward.1} parent=11 // pred_region
          _
        $region44: #{gcn_encoder_forward.1} parent=11 // pred_fallthru
          _
      $region12: #{gcn_encoder_forward.1} parent=5 // pred_fallthru
        _
      %p301 = scmp.lt.s32.totalorder %s16, 2
      // Predicated region
      $region45: #{gcn_encoder_forward.1} parent=5 // pred_check
        %p302 = pneg %p301
      $region46: #{gcn_encoder_forward.1} parent=5 // pred_check_branch
        %304 = sbr.rel (%p302) target = $region48
      $region47: #{gcn_encoder_forward.1} parent=5 // pred_region
        _
      $region48: #{gcn_encoder_forward.1} parent=5 // pred_fallthru
        _
      %p305 = scmp.le.s32.totalorder 1, %s16
      %p306 = scmp.lt.s32.totalorder %s16, 3
      %p307 = pnand %p305, %p306
      %p308 = pneg %p307
      // Predicated region
      $region49: #{gcn_encoder_forward.1} parent=5 // pred_check
        _
      $region50: #{gcn_encoder_forward.1} parent=5 // pred_check_branch
        %310 = sbr.rel (%p307) target = $region52
      $region51: #{gcn_encoder_forward.1} parent=5 // pred_region
        %s311 = ssub.s32 %s16, 1
        // Predicated region
        $region53: #{gcn_encoder_forward.1} parent=51 // pred_check
          %p312 = pneg %p54
        $region54: #{gcn_encoder_forward.1} parent=51 // pred_check_branch
          %314 = sbr.rel (%p312) target = $region56
        $region55: #{gcn_encoder_forward.1} parent=51 // pred_region
          %315 = dma.done [#allocation4], 512
        $region56: #{gcn_encoder_forward.1} parent=51 // pred_fallthru
          _
        // Predicated region
        $region57: #{gcn_encoder_forward.1} parent=51 // pred_check
          %p316 = pneg %p159
        $region58: #{gcn_encoder_forward.1} parent=51 // pred_check_branch
          %318 = sbr.rel (%p316) target = $region60
        $region59: #{gcn_encoder_forward.1} parent=51 // pred_region
          %319 = dma.done [#allocation6], 1024
        $region60: #{gcn_encoder_forward.1} parent=51 // pred_fallthru
          _
        // Predicated region
        $region61: #{gcn_encoder_forward.1} parent=51 // pred_check
          %p320 = pneg %p180
        $region62: #{gcn_encoder_forward.1} parent=51 // pred_check_branch
          %322 = sbr.rel (%p320) target = $region64
        $region63: #{gcn_encoder_forward.1} parent=51 // pred_region
          %323 = dma.done [#allocation6], 1024
        $region64: #{gcn_encoder_forward.1} parent=51 // pred_fallthru
          _
        %p324 = pneg %p54
        %p325 = pneg %p51
        %p326 = pneg %p75
        %p327 = pneg %p72
        %p328 = pneg %p96
        %p329 = pneg %p93
        %p330 = pneg %p117
        %p331 = pneg %p114
        %p332 = pneg %p138
        %p333 = pneg %p135
        %p334 = pneg %p159
        %p335 = pneg %p156
        %p336 = pneg %p180
        %p337 = pneg %p177
        %p338 = pneg %p201
        %p339 = pneg %p198
        %p340 = pneg %p229
        %p341 = pneg %p226
        %s342 = smul.u32 %s26, %s25
        %s343 = smul.u32 8, %s342
        %p344 = scmp.lt.s32.totalorder %s343, 7
        %s345 = scalar_select %p344, %s343, 7
        %s346 = smul.addr %s345, 8
        %s347 = scalar_lea.vmem %s8, %s346
        %s348 = smul.u32 8, %s26
        %s349 = smul.u32 %s26, %s25
        %s350 = smul.u32 8, %s349
        %p351 = scmp.lt.s32.totalorder %s350, 7
        %s352 = scalar_select %p351, %s350, 7
        %s353 = smul.addr %s352, 8
        %s354 = scalar_lea.vmem %s8, %s353
        %s355 = smul.u32 %s26, %s25
        %s356 = smul.u32 8, %s355
        %s358 = smul.u32 %s26, 64
        %p359 = scmp.eq.s32.totalorder %s25, 0
        // Predicated region
        $region65: #{gcn_encoder_forward.1} parent=51 // pred_check
          %p360 = pneg %p359
        $region66: #{gcn_encoder_forward.1} parent=51 // pred_check_branch
          %362 = sbr.rel (%p360) target = $region68
        $region67: #{gcn_encoder_forward.1} parent=51 // pred_region
          %v363 = vld [vmem:[#allocation3] sm:$0xf]
          %v364 = vld [vmem:[#allocation3 + $0x4] sm:$0xf]
          %v365 = vld [vmem:[#allocation3 + $0x8] sm:$0xf]
          %v366 = vld [vmem:[#allocation3 + $0xc] sm:$0xf]
          %v367 = vld [vmem:[#allocation3 + $0x10] sm:$0xf]
          %v368 = vld [vmem:[#allocation3 + $0x14] sm:$0xf]
          %v369 = vld [vmem:[#allocation3 + $0x18] sm:$0xf]
          %v370 = vld [vmem:[#allocation3 + $0x1c] sm:$0xf]
          %v371 = vld [vmem:[%s1] sm:$0xf]
          %v372 = vld [vmem:[%s1 + $0x4] sm:$0xf]
          %v373 = vld [vmem:[%s1 + $0x8] sm:$0xf]
          %v374 = vld [vmem:[%s1 + $0xc] sm:$0xf]
          %v375 = vld [vmem:[%s1 + $0x10] sm:$0xf]
          %v376 = vld [vmem:[%s1 + $0x14] sm:$0xf]
          %v377 = vld [vmem:[%s1 + $0x18] sm:$0xf]
          %v378 = vld [vmem:[%s1 + $0x1c] sm:$0xf]
          %v387 = vunpack.c.l.b16 %v363
          %v388 = vunpack.c.l.b16 %v364
          %v389 = vunpack.c.l.b16 %v365
          %v390 = vunpack.c.l.b16 %v366
          %v391 = vunpack.c.l.b16 %v367
          %v392 = vunpack.c.l.b16 %v368
          %v393 = vunpack.c.l.b16 %v369
          %v394 = vunpack.c.l.b16 %v370
          %v395 = vpack.c.b16 %v388, %v387
          %v396 = vpack.c.b16 %v390, %v389
          %v397 = vpack.c.b16 %v392, %v391
          %v398 = vpack.c.b16 %v394, %v393
          %v407 = vunpack.c.l.b16 %v371
          %v408 = vunpack.c.l.b16 %v372
          %v409 = vunpack.c.l.b16 %v373
          %v410 = vunpack.c.l.b16 %v374
          %v411 = vunpack.c.l.b16 %v375
          %v412 = vunpack.c.l.b16 %v376
          %v413 = vunpack.c.l.b16 %v377
          %v414 = vunpack.c.l.b16 %v378
          %v415 = vpack.c.b16 %v408, %v407
          %v416 = vpack.c.b16 %v410, %v409
          %v417 = vpack.c.b16 %v412, %v411
          %v418 = vpack.c.b16 %v414, %v413
          %vm423 = vcmask 523264
          %v425 = vsel %vm423, %v395, 0
          %v428 = vsel %vm423, %v396, 0
          %v431 = vsel %vm423, %v397, 0
          %v434 = vsel %vm423, %v398, 0
          %436 = vmatprep.subr.bf16.mxu0 0
          %437 = vmatpush1.bf16.msra.mxu0 0
          %438 = vmatprep.subr.bf16.mxu0 0
          %439 = vmatpush1.bf16.msra.mxu0 0
          %440 = vmatprep.subr.bf16.mxu0 0
          %441 = vmatpush1.bf16.msra.mxu0 0
          %442 = vmatprep.subr.bf16.mxu0 0
          %443 = vmatpush1.bf16.msra.mxu0 0
          %444 = vmatprep.subr.bf16.mxu0 0
          %445 = vmatpush1.bf16.msra.mxu0 %v418
          %446 = vmatprep.subr.bf16.mxu0 0
          %447 = vmatpush1.bf16.msra.mxu0 %v417
          %448 = vmatprep.subr.bf16.mxu0 0
          %449 = vmatpush1.bf16.msra.mxu0 %v416
          %450 = vmatprep.subr.bf16.mxu0 0
          %451 = vmatpush1.bf16.msra.mxu0 %v415
          %452 = vmatprep.subr.bf16.mxu0 0
          %453 = vmatpush2.bf16.msra.mxu0 0
          %454 = vmatprep.subr.bf16.mxu0 0
          %455 = vmatpush2.bf16.msra.mxu0 0
          %456 = vmatprep.subr.bf16.mxu0 0
          %457 = vmatpush2.bf16.msra.mxu0 0
          %458 = vmatprep.subr.bf16.mxu0 0
          %459 = vmatpush2.bf16.msra.mxu0 0
          %460 = vmatprep.subr.bf16.mxu0 0
          %461 = vmatpush2.bf16.msra.mxu0 0
          %462 = vmatprep.subr.bf16.mxu0 0
          %463 = vmatpush2.bf16.msra.mxu0 0
          %464 = vmatprep.subr.bf16.mxu0 0
          %465 = vmatpush2.bf16.msra.mxu0 0
          %466 = vmatprep.subr.bf16.mxu0 0
          %467 = vmatpush2.bf16.msra.mxu0 0
          %468 = vmatprep.mubr.bf16.mxu0 0
          %469 = vmatmul.mubr.bf16.gmra.mxu0 %v425
          %v470 = vpop.f32.mrf.mxu0
          %v471 = vadd.f32 0.0, %v470
          %v472 = vpop.f32.mrf.mxu0
          %v473 = vpop.f32.mrf.mxu0
          %v474 = vadd.f32 0.0, %v473
          %v475 = vpop.f32.mrf.mxu0
          %476 = vmatprep.mubr.bf16.mxu0 0
          %477 = vmatmul.mubr.bf16.gmra.mxu0 %v428
          %v478 = vpop.f32.mrf.mxu0
          %v479 = vadd.f32 0.0, %v478
          %v480 = vpop.f32.mrf.mxu0
          %v481 = vpop.f32.mrf.mxu0
          %v482 = vadd.f32 0.0, %v481
          %v483 = vpop.f32.mrf.mxu0
          %484 = vmatprep.mubr.bf16.mxu0 0
          %485 = vmatmul.mubr.bf16.gmra.mxu0 %v431
          %v486 = vpop.f32.mrf.mxu0
          %v487 = vadd.f32 0.0, %v486
          %v488 = vpop.f32.mrf.mxu0
          %v489 = vpop.f32.mrf.mxu0
          %v490 = vadd.f32 0.0, %v489
          %v491 = vpop.f32.mrf.mxu0
          %492 = vmatprep.mubr.bf16.mxu0 0
          %493 = vmatmul.mubr.bf16.gmra.mxu0 %v434
          %v494 = vpop.f32.mrf.mxu0
          %v495 = vadd.f32 0.0, %v494
          %v496 = vpop.f32.mrf.mxu0
          %v497 = vpop.f32.mrf.mxu0
          %v498 = vadd.f32 0.0, %v497
          %v499 = vpop.f32.mrf.mxu0
          %500 = vdwg.mxu0
          %v501 = vpack.c.bf16 %v474, %v471
          %v502 = vpack.c.bf16 %v482, %v479
          %v503 = vpack.c.bf16 %v490, %v487
          %v504 = vpack.c.bf16 %v498, %v495
          %v505 = vld [vmem:[%s2] sm:$0xf]
          %v506 = vld [vmem:[%s2 + $0x4] sm:$0xf]
          %v507 = vld [vmem:[%s2 + $0x8] sm:$0xf]
          %v508 = vld [vmem:[%s2 + $0xc] sm:$0xf]
          %v509 = vld [vmem:[%s2 + $0x10] sm:$0xf]
          %v510 = vld [vmem:[%s2 + $0x14] sm:$0xf]
          %v511 = vld [vmem:[%s2 + $0x18] sm:$0xf]
          %v512 = vld [vmem:[%s2 + $0x1c] sm:$0xf]
          %v513 = vld [vmem:[%s2 + $0x20] sm:$0xf]
          %v514 = vld [vmem:[%s2 + $0x24] sm:$0xf]
          %v515 = vld [vmem:[%s2 + $0x28] sm:$0xf]
          %v516 = vld [vmem:[%s2 + $0x2c] sm:$0xf]
          %v517 = vld [vmem:[%s2 + $0x30] sm:$0xf]
          %v518 = vld [vmem:[%s2 + $0x34] sm:$0xf]
          %v519 = vld [vmem:[%s2 + $0x38] sm:$0xf]
          %v520 = vld [vmem:[%s2 + $0x3c] sm:$0xf]
          %s521 = sshra.s32 %s358, 3
          %s522 = sand.u32 %s358, 7
          %s523 = smul.addr %s521, 4
          %s524 = scalar_lea.vmem %s1, %s523
          %v525 = vld [vmem:[%s524] sm:$0xf]
          %v526 = vld [vmem:[%s524 + $0x4] sm:$0xf]
          %v527 = vld [vmem:[%s524 + $0x8] sm:$0xf]
          %v528 = vld [vmem:[%s524 + $0xc] sm:$0xf]
          %v529 = vld [vmem:[%s524 + $0x10] sm:$0xf]
          %v530 = vld [vmem:[%s524 + $0x14] sm:$0xf]
          %v531 = vld [vmem:[%s524 + $0x18] sm:$0xf]
          %v532 = vld [vmem:[%s524 + $0x1c] sm:$0xf]
          %v533 = vld [vmem:[%s3] sm:$0xf]
          %v534 = vld [vmem:[%s3 + $0x4] sm:$0xf]
          %v535 = vld [vmem:[%s3 + $0x8] sm:$0xf]
          %v536 = vld [vmem:[%s3 + $0xc] sm:$0xf]
          %v537 = vld [vmem:[%s3 + $0x10] sm:$0xf]
          %v538 = vld [vmem:[%s3 + $0x14] sm:$0xf]
          %v539 = vld [vmem:[%s3 + $0x18] sm:$0xf]
          %v540 = vld [vmem:[%s3 + $0x1c] sm:$0xf]
          %v541 = vld [vmem:[%s3 + $0x20] sm:$0xf]
          %v542 = vld [vmem:[%s3 + $0x24] sm:$0xf]
          %v543 = vld [vmem:[%s3 + $0x28] sm:$0xf]
          %v544 = vld [vmem:[%s3 + $0x2c] sm:$0xf]
          %v545 = vld [vmem:[%s3 + $0x30] sm:$0xf]
          %v546 = vld [vmem:[%s3 + $0x34] sm:$0xf]
          %v547 = vld [vmem:[%s3 + $0x38] sm:$0xf]
          %v548 = vld [vmem:[%s3 + $0x3c] sm:$0xf]
          %v557 = vunpack.c.l.b16 %v525
          %v558 = vunpack.c.l.b16 %v526
          %v559 = vunpack.c.l.b16 %v527
          %v560 = vunpack.c.l.b16 %v528
          %v561 = vunpack.c.l.b16 %v529
          %v562 = vunpack.c.l.b16 %v530
          %v563 = vunpack.c.l.b16 %v531
          %v564 = vunpack.c.l.b16 %v532
          %v565 = vpack.c.b16 %v558, %v557
          %v566 = vpack.c.b16 %v560, %v559
          %v567 = vpack.c.b16 %v562, %v561
          %v568 = vpack.c.b16 %v564, %v563
          %v589 = vunpack.c.l.b16 %v533
          %v590 = vunpack.c.l.b16 %v534
          %v591 = vunpack.c.l.b16 %v535
          %v592 = vunpack.c.l.b16 %v536
          %v593 = vunpack.c.l.b16 %v537
          %v594 = vunpack.c.l.b16 %v538
          %v595 = vunpack.c.l.b16 %v539
          %v596 = vunpack.c.l.b16 %v540
          %v597 = vunpack.c.l.b16 %v541
          %v598 = vunpack.c.l.b16 %v542
          %v599 = vunpack.c.l.b16 %v543
          %v600 = vunpack.c.l.b16 %v544
          %v601 = vunpack.c.l.b16 %v545
          %v602 = vunpack.c.l.b16 %v546
          %v603 = vunpack.c.l.b16 %v547
          %v604 = vunpack.c.l.b16 %v548
          %v605 = vpack.c.b16 %v590, %v589
          %v606 = vpack.c.b16 %v592, %v591
          %v607 = vpack.c.b16 %v594, %v593
          %v608 = vpack.c.b16 %v596, %v595
          %v609 = vpack.c.b16 %v598, %v597
          %v610 = vpack.c.b16 %v600, %v599
          %v611 = vpack.c.b16 %v602, %v601
          %v612 = vpack.c.b16 %v604, %v603
          %621 = vmatprep.subr.bf16.mxu0 0
          %622 = vmatpush1.bf16.msra.mxu0 %v612
          %623 = vmatprep.subr.bf16.mxu0 0
          %624 = vmatpush1.bf16.msra.mxu0 %v611
          %625 = vmatprep.subr.bf16.mxu0 0
          %626 = vmatpush1.bf16.msra.mxu0 %v610
          %627 = vmatprep.subr.bf16.mxu0 0
          %628 = vmatpush1.bf16.msra.mxu0 %v609
          %629 = vmatprep.subr.bf16.mxu0 0
          %630 = vmatpush1.bf16.msra.mxu0 %v608
          %631 = vmatprep.subr.bf16.mxu0 0
          %632 = vmatpush1.bf16.msra.mxu0 %v607
          %633 = vmatprep.subr.bf16.mxu0 0
          %634 = vmatpush1.bf16.msra.mxu0 %v606
          %635 = vmatprep.subr.bf16.mxu0 0
          %636 = vmatpush1.bf16.msra.mxu0 %v605
          %637 = vmatprep.subr.bf16.mxu0 0
          %638 = vmatpush2.bf16.msra.mxu0 0
          %639 = vmatprep.subr.bf16.mxu0 0
          %640 = vmatpush2.bf16.msra.mxu0 0
          %641 = vmatprep.subr.bf16.mxu0 0
          %642 = vmatpush2.bf16.msra.mxu0 0
          %643 = vmatprep.subr.bf16.mxu0 0
          %644 = vmatpush2.bf16.msra.mxu0 0
          %645 = vmatprep.subr.bf16.mxu0 0
          %646 = vmatpush2.bf16.msra.mxu0 0
          %647 = vmatprep.subr.bf16.mxu0 0
          %648 = vmatpush2.bf16.msra.mxu0 0
          %649 = vmatprep.subr.bf16.mxu0 0
          %650 = vmatpush2.bf16.msra.mxu0 0
          %651 = vmatprep.subr.bf16.mxu0 0
          %652 = vmatpush2.bf16.msra.mxu0 0
          %653 = vmatprep.mubr.bf16.mxu0 0
          %654 = vmatmul.mubr.bf16.gmra.mxu0 %v565
          %v655 = vpop.f32.mrf.mxu0
          %v656 = vadd.f32 0.0, %v655
          %v657 = vpop.f32.mrf.mxu0
          %v658 = vpop.f32.mrf.mxu0
          %v659 = vadd.f32 0.0, %v658
          %v660 = vpop.f32.mrf.mxu0
          %661 = vmatprep.mubr.bf16.mxu0 0
          %662 = vmatmul.mubr.bf16.gmra.mxu0 %v566
          %v663 = vpop.f32.mrf.mxu0
          %v664 = vadd.f32 0.0, %v663
          %v665 = vpop.f32.mrf.mxu0
          %v666 = vpop.f32.mrf.mxu0
          %v667 = vadd.f32 0.0, %v666
          %v668 = vpop.f32.mrf.mxu0
          %669 = vmatprep.mubr.bf16.mxu0 0
          %670 = vmatmul.mubr.bf16.gmra.mxu0 %v567
          %v671 = vpop.f32.mrf.mxu0
          %v672 = vadd.f32 0.0, %v671
          %v673 = vpop.f32.mrf.mxu0
          %v674 = vpop.f32.mrf.mxu0
          %v675 = vadd.f32 0.0, %v674
          %v676 = vpop.f32.mrf.mxu0
          %677 = vmatprep.mubr.bf16.mxu0 0
          %678 = vmatmul.mubr.bf16.gmra.mxu0 %v568
          %v679 = vpop.f32.mrf.mxu0
          %v680 = vadd.f32 0.0, %v679
          %v681 = vpop.f32.mrf.mxu0
          %v682 = vpop.f32.mrf.mxu0
          %v683 = vadd.f32 0.0, %v682
          %v684 = vpop.f32.mrf.mxu0
          %685 = vdwg.mxu0
          %v702 = vunpack.c.l.b16 %v505
          %v703 = vunpack.c.l.b16 %v506
          %v704 = vunpack.c.l.b16 %v507
          %v705 = vunpack.c.l.b16 %v508
          %v706 = vunpack.c.l.b16 %v509
          %v707 = vunpack.c.l.b16 %v510
          %v708 = vunpack.c.l.b16 %v511
          %v709 = vunpack.c.l.b16 %v512
          %v710 = vunpack.c.l.b16 %v513
          %v711 = vunpack.c.l.b16 %v514
          %v712 = vunpack.c.l.b16 %v515
          %v713 = vunpack.c.l.b16 %v516
          %v714 = vunpack.c.l.b16 %v517
          %v715 = vunpack.c.l.b16 %v518
          %v716 = vunpack.c.l.b16 %v519
          %v717 = vunpack.c.l.b16 %v520
          %v718 = vpack.c.b16 %v703, %v702
          %v719 = vpack.c.b16 %v705, %v704
          %v720 = vpack.c.b16 %v707, %v706
          %v721 = vpack.c.b16 %v709, %v708
          %v722 = vpack.c.b16 %v711, %v710
          %v723 = vpack.c.b16 %v713, %v712
          %v724 = vpack.c.b16 %v715, %v714
          %v725 = vpack.c.b16 %v717, %v716
          %734 = vmatprep.subr.bf16.mxu0 0
          %735 = vmatpush1.bf16.msra.mxu0 %v725
          %736 = vmatprep.subr.bf16.mxu0 0
          %737 = vmatpush1.bf16.msra.mxu0 %v724
          %738 = vmatprep.subr.bf16.mxu0 0
          %739 = vmatpush1.bf16.msra.mxu0 %v723
          %740 = vmatprep.subr.bf16.mxu0 0
          %741 = vmatpush1.bf16.msra.mxu0 %v722
          %742 = vmatprep.subr.bf16.mxu0 0
          %743 = vmatpush1.bf16.msra.mxu0 %v721
          %744 = vmatprep.subr.bf16.mxu0 0
          %745 = vmatpush1.bf16.msra.mxu0 %v720
          %746 = vmatprep.subr.bf16.mxu0 0
          %747 = vmatpush1.bf16.msra.mxu0 %v719
          %748 = vmatprep.subr.bf16.mxu0 0
          %749 = vmatpush1.bf16.msra.mxu0 %v718
          %750 = vmatprep.subr.bf16.mxu0 0
          %751 = vmatpush2.bf16.msra.mxu0 0
          %752 = vmatprep.subr.bf16.mxu0 0
          %753 = vmatpush2.bf16.msra.mxu0 0
          %754 = vmatprep.subr.bf16.mxu0 0
          %755 = vmatpush2.bf16.msra.mxu0 0
          %756 = vmatprep.subr.bf16.mxu0 0
          %757 = vmatpush2.bf16.msra.mxu0 0
          %758 = vmatprep.subr.bf16.mxu0 0
          %759 = vmatpush2.bf16.msra.mxu0 0
          %760 = vmatprep.subr.bf16.mxu0 0
          %761 = vmatpush2.bf16.msra.mxu0 0
          %762 = vmatprep.subr.bf16.mxu0 0
          %763 = vmatpush2.bf16.msra.mxu0 0
          %764 = vmatprep.subr.bf16.mxu0 0
          %765 = vmatpush2.bf16.msra.mxu0 0
          %766 = vmatprep.mubr.bf16.mxu0 0
          %767 = vmatmul.mubr.bf16.gmra.mxu0 %v501
          %v768 = vpop.f32.mrf.mxu0
          %v769 = vadd.f32 %v656, %v768
          %v770 = vpop.f32.mrf.mxu0
          %v771 = vpop.f32.mrf.mxu0
          %v772 = vadd.f32 %v659, %v771
          %v773 = vpop.f32.mrf.mxu0
          %774 = vmatprep.mubr.bf16.mxu0 0
          %775 = vmatmul.mubr.bf16.gmra.mxu0 %v502
          %v776 = vpop.f32.mrf.mxu0
          %v777 = vadd.f32 %v664, %v776
          %v778 = vpop.f32.mrf.mxu0
          %v779 = vpop.f32.mrf.mxu0
          %v780 = vadd.f32 %v667, %v779
          %v781 = vpop.f32.mrf.mxu0
          %782 = vmatprep.mubr.bf16.mxu0 0
          %783 = vmatmul.mubr.bf16.gmra.mxu0 %v503
          %v784 = vpop.f32.mrf.mxu0
          %v785 = vadd.f32 %v672, %v784
          %v786 = vpop.f32.mrf.mxu0
          %v787 = vpop.f32.mrf.mxu0
          %v788 = vadd.f32 %v675, %v787
          %v789 = vpop.f32.mrf.mxu0
          %790 = vmatprep.mubr.bf16.mxu0 0
          %791 = vmatmul.mubr.bf16.gmra.mxu0 %v504
          %v792 = vpop.f32.mrf.mxu0
          %v793 = vadd.f32 %v680, %v792
          %v794 = vpop.f32.mrf.mxu0
          %v795 = vpop.f32.mrf.mxu0
          %v796 = vadd.f32 %v683, %v795
          %v797 = vpop.f32.mrf.mxu0
          %798 = vdwg.mxu0
          %v799 = vld [vmem:[%s4] sm:$0x1]
          %v801 = vlaneseq
          %v802 = vshrl.u32 %v801, 7
          %v803 = vsub.s32 0, %v802
          %v804 = vrot.slane %v799, %v803
          %v806 = vadd.f32 %v769, %v804
          %v807 = vadd.f32 %v772, %v804
          %v808 = vadd.f32 %v777, %v804
          %v809 = vadd.f32 %v780, %v804
          %v810 = vadd.f32 %v785, %v804
          %v811 = vadd.f32 %v788, %v804
          %v812 = vadd.f32 %v793, %v804
          %v813 = vadd.f32 %v796, %v804
          %v814 = vmax.f32 %v806, 0.0
          %v815 = vmax.f32 %v807, 0.0
          %v816 = vmax.f32 %v808, 0.0
          %v817 = vmax.f32 %v809, 0.0
          %v818 = vmax.f32 %v810, 0.0
          %v819 = vmax.f32 %v811, 0.0
          %v820 = vmax.f32 %v812, 0.0
          %v821 = vmax.f32 %v813, 0.0
          %v822 = vpack.c.bf16 %v815, %v814
          %v823 = vpack.c.bf16 %v817, %v816
          %v824 = vpack.c.bf16 %v819, %v818
          %v825 = vpack.c.bf16 %v821, %v820
          %v830 = vunpack.c.l.b16 %v822
          %v831 = vunpack.c.h.b16 %v822
          %v832 = vunpack.c.l.b16 %v823
          %v833 = vunpack.c.h.b16 %v823
          %v834 = vunpack.c.l.b16 %v824
          %v835 = vunpack.c.h.b16 %v824
          %v836 = vunpack.c.l.b16 %v825
          %v837 = vunpack.c.h.b16 %v825
          %v838 = vpack.c.b16 %v830, %v830
          %v839 = vpack.c.b16 %v831, %v831
          %v840 = vpack.c.b16 %v832, %v832
          %v841 = vpack.c.b16 %v833, %v833
          %v842 = vpack.c.b16 %v834, %v834
          %v843 = vpack.c.b16 %v835, %v835
          %v844 = vpack.c.b16 %v836, %v836
          %v845 = vpack.c.b16 %v837, %v837
          %s854 = smul.addr %s521, 4
          %s855 = scalar_lea.vmem [#allocation2], %s854
          %856 = vst [vmem:[%s855] sm:$0xf] %v838
          %857 = vst [vmem:[%s855 + $0x4] sm:$0xf] %v839
          %858 = vst [vmem:[%s855 + $0x8] sm:$0xf] %v840
          %859 = vst [vmem:[%s855 + $0xc] sm:$0xf] %v841
          %860 = vst [vmem:[%s855 + $0x10] sm:$0xf] %v842
          %861 = vst [vmem:[%s855 + $0x14] sm:$0xf] %v843
          %862 = vst [vmem:[%s855 + $0x18] sm:$0xf] %v844
          %863 = vst [vmem:[%s855 + $0x1c] sm:$0xf] %v845
        $region68: #{gcn_encoder_forward.1} parent=51 // pred_fallthru
          _
        %p864 = scmp.eq.s32.totalorder %s25, 1
        // Predicated region
        $region69: #{gcn_encoder_forward.1} parent=51 // pred_check
          %p865 = pneg %p864
        $region70: #{gcn_encoder_forward.1} parent=51 // pred_check_branch
          %867 = sbr.rel (%p865) target = $region72
        $region71: #{gcn_encoder_forward.1} parent=51 // pred_region
          %v868 = vld [vmem:[#allocation3] sm:$0xf]
          %v869 = vld [vmem:[#allocation3 + $0x4] sm:$0xf]
          %v870 = vld [vmem:[#allocation3 + $0x8] sm:$0xf]
          %v871 = vld [vmem:[#allocation3 + $0xc] sm:$0xf]
          %v872 = vld [vmem:[#allocation3 + $0x10] sm:$0xf]
          %v873 = vld [vmem:[#allocation3 + $0x14] sm:$0xf]
          %v874 = vld [vmem:[#allocation3 + $0x18] sm:$0xf]
          %v875 = vld [vmem:[#allocation3 + $0x1c] sm:$0xf]
          %v876 = vld [vmem:[#allocation2] sm:$0xf]
          %v877 = vld [vmem:[#allocation2 + $0x4] sm:$0xf]
          %v878 = vld [vmem:[#allocation2 + $0x8] sm:$0xf]
          %v879 = vld [vmem:[#allocation2 + $0xc] sm:$0xf]
          %v880 = vld [vmem:[#allocation2 + $0x10] sm:$0xf]
          %v881 = vld [vmem:[#allocation2 + $0x14] sm:$0xf]
          %v882 = vld [vmem:[#allocation2 + $0x18] sm:$0xf]
          %v883 = vld [vmem:[#allocation2 + $0x1c] sm:$0xf]
          %v892 = vunpack.c.l.b16 %v868
          %v893 = vunpack.c.l.b16 %v869
          %v894 = vunpack.c.l.b16 %v870
          %v895 = vunpack.c.l.b16 %v871
          %v896 = vunpack.c.l.b16 %v872
          %v897 = vunpack.c.l.b16 %v873
          %v898 = vunpack.c.l.b16 %v874
          %v899 = vunpack.c.l.b16 %v875
          %v900 = vpack.c.b16 %v893, %v892
          %v901 = vpack.c.b16 %v895, %v894
          %v902 = vpack.c.b16 %v897, %v896
          %v903 = vpack.c.b16 %v899, %v898
          %v912 = vunpack.c.l.b16 %v876
          %v913 = vunpack.c.l.b16 %v877
          %v914 = vunpack.c.l.b16 %v878
          %v915 = vunpack.c.l.b16 %v879
          %v916 = vunpack.c.l.b16 %v880
          %v917 = vunpack.c.l.b16 %v881
          %v918 = vunpack.c.l.b16 %v882
          %v919 = vunpack.c.l.b16 %v883
          %v920 = vpack.c.b16 %v913, %v912
          %v921 = vpack.c.b16 %v915, %v914
          %v922 = vpack.c.b16 %v917, %v916
          %v923 = vpack.c.b16 %v919, %v918
          %vm928 = vcmask 523264
          %v930 = vsel %vm928, %v900, 0
          %v933 = vsel %vm928, %v901, 0
          %v936 = vsel %vm928, %v902, 0
          %v939 = vsel %vm928, %v903, 0
          %941 = vmatprep.subr.bf16.mxu0 0
          %942 = vmatpush1.bf16.msra.mxu0 0
          %943 = vmatprep.subr.bf16.mxu0 0
          %944 = vmatpush1.bf16.msra.mxu0 0
          %945 = vmatprep.subr.bf16.mxu0 0
          %946 = vmatpush1.bf16.msra.mxu0 0
          %947 = vmatprep.subr.bf16.mxu0 0
          %948 = vmatpush1.bf16.msra.mxu0 0
          %949 = vmatprep.subr.bf16.mxu0 0
          %950 = vmatpush1.bf16.msra.mxu0 %v923
          %951 = vmatprep.subr.bf16.mxu0 0
          %952 = vmatpush1.bf16.msra.mxu0 %v922
          %953 = vmatprep.subr.bf16.mxu0 0
          %954 = vmatpush1.bf16.msra.mxu0 %v921
          %955 = vmatprep.subr.bf16.mxu0 0
          %956 = vmatpush1.bf16.msra.mxu0 %v920
          %957 = vmatprep.subr.bf16.mxu0 0
          %958 = vmatpush2.bf16.msra.mxu0 0
          %959 = vmatprep.subr.bf16.mxu0 0
          %960 = vmatpush2.bf16.msra.mxu0 0
          %961 = vmatprep.subr.bf16.mxu0 0
          %962 = vmatpush2.bf16.msra.mxu0 0
          %963 = vmatprep.subr.bf16.mxu0 0
          %964 = vmatpush2.bf16.msra.mxu0 0
          %965 = vmatprep.subr.bf16.mxu0 0
          %966 = vmatpush2.bf16.msra.mxu0 0
          %967 = vmatprep.subr.bf16.mxu0 0
          %968 = vmatpush2.bf16.msra.mxu0 0
          %969 = vmatprep.subr.bf16.mxu0 0
          %970 = vmatpush2.bf16.msra.mxu0 0
          %971 = vmatprep.subr.bf16.mxu0 0
          %972 = vmatpush2.bf16.msra.mxu0 0
          %973 = vmatprep.mubr.bf16.mxu0 0
          %974 = vmatmul.mubr.bf16.gmra.mxu0 %v930
          %v975 = vpop.f32.mrf.mxu0
          %v976 = vadd.f32 0.0, %v975
          %v977 = vpop.f32.mrf.mxu0
          %v978 = vpop.f32.mrf.mxu0
          %v979 = vadd.f32 0.0, %v978
          %v980 = vpop.f32.mrf.mxu0
          %981 = vmatprep.mubr.bf16.mxu0 0
          %982 = vmatmul.mubr.bf16.gmra.mxu0 %v933
          %v983 = vpop.f32.mrf.mxu0
          %v984 = vadd.f32 0.0, %v983
          %v985 = vpop.f32.mrf.mxu0
          %v986 = vpop.f32.mrf.mxu0
          %v987 = vadd.f32 0.0, %v986
          %v988 = vpop.f32.mrf.mxu0
          %989 = vmatprep.mubr.bf16.mxu0 0
          %990 = vmatmul.mubr.bf16.gmra.mxu0 %v936
          %v991 = vpop.f32.mrf.mxu0
          %v992 = vadd.f32 0.0, %v991
          %v993 = vpop.f32.mrf.mxu0
          %v994 = vpop.f32.mrf.mxu0
          %v995 = vadd.f32 0.0, %v994
          %v996 = vpop.f32.mrf.mxu0
          %997 = vmatprep.mubr.bf16.mxu0 0
          %998 = vmatmul.mubr.bf16.gmra.mxu0 %v939
          %v999 = vpop.f32.mrf.mxu0
          %v1000 = vadd.f32 0.0, %v999
          %v1001 = vpop.f32.mrf.mxu0
          %v1002 = vpop.f32.mrf.mxu0
          %v1003 = vadd.f32 0.0, %v1002
          %v1004 = vpop.f32.mrf.mxu0
          %1005 = vdwg.mxu0
          %v1006 = vpack.c.bf16 %v979, %v976
          %v1007 = vpack.c.bf16 %v987, %v984
          %v1008 = vpack.c.bf16 %v995, %v992
          %v1009 = vpack.c.bf16 %v1003, %v1000
          %v1010 = vld [vmem:[#allocation5] sm:$0xf]
          %v1011 = vld [vmem:[#allocation5 + $0x4] sm:$0xf]
          %v1012 = vld [vmem:[#allocation5 + $0x8] sm:$0xf]
          %v1013 = vld [vmem:[#allocation5 + $0xc] sm:$0xf]
          %v1014 = vld [vmem:[#allocation5 + $0x10] sm:$0xf]
          %v1015 = vld [vmem:[#allocation5 + $0x14] sm:$0xf]
          %v1016 = vld [vmem:[#allocation5 + $0x18] sm:$0xf]
          %v1017 = vld [vmem:[#allocation5 + $0x1c] sm:$0xf]
          %v1018 = vld [vmem:[#allocation5 + $0x20] sm:$0xf]
          %v1019 = vld [vmem:[#allocation5 + $0x24] sm:$0xf]
          %v1020 = vld [vmem:[#allocation5 + $0x28] sm:$0xf]
          %v1021 = vld [vmem:[#allocation5 + $0x2c] sm:$0xf]
          %v1022 = vld [vmem:[#allocation5 + $0x30] sm:$0xf]
          %v1023 = vld [vmem:[#allocation5 + $0x34] sm:$0xf]
          %v1024 = vld [vmem:[#allocation5 + $0x38] sm:$0xf]
          %v1025 = vld [vmem:[#allocation5 + $0x3c] sm:$0xf]
          %s1026 = sshra.s32 %s358, 3
          %s1027 = sand.u32 %s358, 7
          %s1028 = smul.addr %s1026, 4
          %s1029 = scalar_lea.vmem [#allocation2], %s1028
          %v1030 = vld [vmem:[%s1029] sm:$0xf]
          %v1031 = vld [vmem:[%s1029 + $0x4] sm:$0xf]
          %v1032 = vld [vmem:[%s1029 + $0x8] sm:$0xf]
          %v1033 = vld [vmem:[%s1029 + $0xc] sm:$0xf]
          %v1034 = vld [vmem:[%s1029 + $0x10] sm:$0xf]
          %v1035 = vld [vmem:[%s1029 + $0x14] sm:$0xf]
          %v1036 = vld [vmem:[%s1029 + $0x18] sm:$0xf]
          %v1037 = vld [vmem:[%s1029 + $0x1c] sm:$0xf]
          %v1038 = vld [vmem:[#allocation7] sm:$0xf]
          %v1039 = vld [vmem:[#allocation7 + $0x4] sm:$0xf]
          %v1040 = vld [vmem:[#allocation7 + $0x8] sm:$0xf]
          %v1041 = vld [vmem:[#allocation7 + $0xc] sm:$0xf]
          %v1042 = vld [vmem:[#allocation7 + $0x10] sm:$0xf]
          %v1043 = vld [vmem:[#allocation7 + $0x14] sm:$0xf]
          %v1044 = vld [vmem:[#allocation7 + $0x18] sm:$0xf]
          %v1045 = vld [vmem:[#allocation7 + $0x1c] sm:$0xf]
          %v1046 = vld [vmem:[#allocation7 + $0x20] sm:$0xf]
          %v1047 = vld [vmem:[#allocation7 + $0x24] sm:$0xf]
          %v1048 = vld [vmem:[#allocation7 + $0x28] sm:$0xf]
          %v1049 = vld [vmem:[#allocation7 + $0x2c] sm:$0xf]
          %v1050 = vld [vmem:[#allocation7 + $0x30] sm:$0xf]
          %v1051 = vld [vmem:[#allocation7 + $0x34] sm:$0xf]
          %v1052 = vld [vmem:[#allocation7 + $0x38] sm:$0xf]
          %v1053 = vld [vmem:[#allocation7 + $0x3c] sm:$0xf]
          %v1062 = vunpack.c.l.b16 %v1030
          %v1063 = vunpack.c.l.b16 %v1031
          %v1064 = vunpack.c.l.b16 %v1032
          %v1065 = vunpack.c.l.b16 %v1033
          %v1066 = vunpack.c.l.b16 %v1034
          %v1067 = vunpack.c.l.b16 %v1035
          %v1068 = vunpack.c.l.b16 %v1036
          %v1069 = vunpack.c.l.b16 %v1037
          %v1070 = vpack.c.b16 %v1063, %v1062
          %v1071 = vpack.c.b16 %v1065, %v1064
          %v1072 = vpack.c.b16 %v1067, %v1066
          %v1073 = vpack.c.b16 %v1069, %v1068
          %v1094 = vunpack.c.l.b16 %v1038
          %v1095 = vunpack.c.l.b16 %v1039
          %v1096 = vunpack.c.l.b16 %v1040
          %v1097 = vunpack.c.l.b16 %v1041
          %v1098 = vunpack.c.l.b16 %v1042
          %v1099 = vunpack.c.l.b16 %v1043
          %v1100 = vunpack.c.l.b16 %v1044
          %v1101 = vunpack.c.l.b16 %v1045
          %v1102 = vunpack.c.l.b16 %v1046
          %v1103 = vunpack.c.l.b16 %v1047
          %v1104 = vunpack.c.l.b16 %v1048
          %v1105 = vunpack.c.l.b16 %v1049
          %v1106 = vunpack.c.l.b16 %v1050
          %v1107 = vunpack.c.l.b16 %v1051
          %v1108 = vunpack.c.l.b16 %v1052
          %v1109 = vunpack.c.l.b16 %v1053
          %v1110 = vpack.c.b16 %v1095, %v1094
          %v1111 = vpack.c.b16 %v1097, %v1096
          %v1112 = vpack.c.b16 %v1099, %v1098
          %v1113 = vpack.c.b16 %v1101, %v1100
          %v1114 = vpack.c.b16 %v1103, %v1102
          %v1115 = vpack.c.b16 %v1105, %v1104
          %v1116 = vpack.c.b16 %v1107, %v1106
          %v1117 = vpack.c.b16 %v1109, %v1108
          %1126 = vmatprep.subr.bf16.mxu0 0
          %1127 = vmatpush1.bf16.msra.mxu0 %v1117
          %1128 = vmatprep.subr.bf16.mxu0 0
          %1129 = vmatpush1.bf16.msra.mxu0 %v1116
          %1130 = vmatprep.subr.bf16.mxu0 0
          %1131 = vmatpush1.bf16.msra.mxu0 %v1115
          %1132 = vmatprep.subr.bf16.mxu0 0
          %1133 = vmatpush1.bf16.msra.mxu0 %v1114
          %1134 = vmatprep.subr.bf16.mxu0 0
          %1135 = vmatpush1.bf16.msra.mxu0 %v1113
          %1136 = vmatprep.subr.bf16.mxu0 0
          %1137 = vmatpush1.bf16.msra.mxu0 %v1112
          %1138 = vmatprep.subr.bf16.mxu0 0
          %1139 = vmatpush1.bf16.msra.mxu0 %v1111
          %1140 = vmatprep.subr.bf16.mxu0 0
          %1141 = vmatpush1.bf16.msra.mxu0 %v1110
          %1142 = vmatprep.subr.bf16.mxu0 0
          %1143 = vmatpush2.bf16.msra.mxu0 0
          %1144 = vmatprep.subr.bf16.mxu0 0
          %1145 = vmatpush2.bf16.msra.mxu0 0
          %1146 = vmatprep.subr.bf16.mxu0 0
          %1147 = vmatpush2.bf16.msra.mxu0 0
          %1148 = vmatprep.subr.bf16.mxu0 0
          %1149 = vmatpush2.bf16.msra.mxu0 0
          %1150 = vmatprep.subr.bf16.mxu0 0
          %1151 = vmatpush2.bf16.msra.mxu0 0
          %1152 = vmatprep.subr.bf16.mxu0 0
          %1153 = vmatpush2.bf16.msra.mxu0 0
          %1154 = vmatprep.subr.bf16.mxu0 0
          %1155 = vmatpush2.bf16.msra.mxu0 0
          %1156 = vmatprep.subr.bf16.mxu0 0
          %1157 = vmatpush2.bf16.msra.mxu0 0
          %1158 = vmatprep.mubr.bf16.mxu0 0
          %1159 = vmatmul.mubr.bf16.gmra.mxu0 %v1070
          %v1160 = vpop.f32.mrf.mxu0
          %v1161 = vadd.f32 0.0, %v1160
          %v1162 = vpop.f32.mrf.mxu0
          %v1163 = vpop.f32.mrf.mxu0
          %v1164 = vadd.f32 0.0, %v1163
          %v1165 = vpop.f32.mrf.mxu0
          %1166 = vmatprep.mubr.bf16.mxu0 0
          %1167 = vmatmul.mubr.bf16.gmra.mxu0 %v1071
          %v1168 = vpop.f32.mrf.mxu0
          %v1169 = vadd.f32 0.0, %v1168
          %v1170 = vpop.f32.mrf.mxu0
          %v1171 = vpop.f32.mrf.mxu0
          %v1172 = vadd.f32 0.0, %v1171
          %v1173 = vpop.f32.mrf.mxu0
          %1174 = vmatprep.mubr.bf16.mxu0 0
          %1175 = vmatmul.mubr.bf16.gmra.mxu0 %v1072
          %v1176 = vpop.f32.mrf.mxu0
          %v1177 = vadd.f32 0.0, %v1176
          %v1178 = vpop.f32.mrf.mxu0
          %v1179 = vpop.f32.mrf.mxu0
          %v1180 = vadd.f32 0.0, %v1179
          %v1181 = vpop.f32.mrf.mxu0
          %1182 = vmatprep.mubr.bf16.mxu0 0
          %1183 = vmatmul.mubr.bf16.gmra.mxu0 %v1073
          %v1184 = vpop.f32.mrf.mxu0
          %v1185 = vadd.f32 0.0, %v1184
          %v1186 = vpop.f32.mrf.mxu0
          %v1187 = vpop.f32.mrf.mxu0
          %v1188 = vadd.f32 0.0, %v1187
          %v1189 = vpop.f32.mrf.mxu0
          %1190 = vdwg.mxu0
          %v1207 = vunpack.c.l.b16 %v1010
          %v1208 = vunpack.c.l.b16 %v1011
          %v1209 = vunpack.c.l.b16 %v1012
          %v1210 = vunpack.c.l.b16 %v1013
          %v1211 = vunpack.c.l.b16 %v1014
          %v1212 = vunpack.c.l.b16 %v1015
          %v1213 = vunpack.c.l.b16 %v1016
          %v1214 = vunpack.c.l.b16 %v1017
          %v1215 = vunpack.c.l.b16 %v1018
          %v1216 = vunpack.c.l.b16 %v1019
          %v1217 = vunpack.c.l.b16 %v1020
          %v1218 = vunpack.c.l.b16 %v1021
          %v1219 = vunpack.c.l.b16 %v1022
          %v1220 = vunpack.c.l.b16 %v1023
          %v1221 = vunpack.c.l.b16 %v1024
          %v1222 = vunpack.c.l.b16 %v1025
          %v1223 = vpack.c.b16 %v1208, %v1207
          %v1224 = vpack.c.b16 %v1210, %v1209
          %v1225 = vpack.c.b16 %v1212, %v1211
          %v1226 = vpack.c.b16 %v1214, %v1213
          %v1227 = vpack.c.b16 %v1216, %v1215
          %v1228 = vpack.c.b16 %v1218, %v1217
          %v1229 = vpack.c.b16 %v1220, %v1219
          %v1230 = vpack.c.b16 %v1222, %v1221
          %1239 = vmatprep.subr.bf16.mxu0 0
          %1240 = vmatpush1.bf16.msra.mxu0 %v1230
          %1241 = vmatprep.subr.bf16.mxu0 0
          %1242 = vmatpush1.bf16.msra.mxu0 %v1229
          %1243 = vmatprep.subr.bf16.mxu0 0
          %1244 = vmatpush1.bf16.msra.mxu0 %v1228
          %1245 = vmatprep.subr.bf16.mxu0 0
          %1246 = vmatpush1.bf16.msra.mxu0 %v1227
          %1247 = vmatprep.subr.bf16.mxu0 0
          %1248 = vmatpush1.bf16.msra.mxu0 %v1226
          %1249 = vmatprep.subr.bf16.mxu0 0
          %1250 = vmatpush1.bf16.msra.mxu0 %v1225
          %1251 = vmatprep.subr.bf16.mxu0 0
          %1252 = vmatpush1.bf16.msra.mxu0 %v1224
          %1253 = vmatprep.subr.bf16.mxu0 0
          %1254 = vmatpush1.bf16.msra.mxu0 %v1223
          %1255 = vmatprep.subr.bf16.mxu0 0
          %1256 = vmatpush2.bf16.msra.mxu0 0
          %1257 = vmatprep.subr.bf16.mxu0 0
          %1258 = vmatpush2.bf16.msra.mxu0 0
          %1259 = vmatprep.subr.bf16.mxu0 0
          %1260 = vmatpush2.bf16.msra.mxu0 0
          %1261 = vmatprep.subr.bf16.mxu0 0
          %1262 = vmatpush2.bf16.msra.mxu0 0
          %1263 = vmatprep.subr.bf16.mxu0 0
          %1264 = vmatpush2.bf16.msra.mxu0 0
          %1265 = vmatprep.subr.bf16.mxu0 0
          %1266 = vmatpush2.bf16.msra.mxu0 0
          %1267 = vmatprep.subr.bf16.mxu0 0
          %1268 = vmatpush2.bf16.msra.mxu0 0
          %1269 = vmatprep.subr.bf16.mxu0 0
          %1270 = vmatpush2.bf16.msra.mxu0 0
          %1271 = vmatprep.mubr.bf16.mxu0 0
          %1272 = vmatmul.mubr.bf16.gmra.mxu0 %v1006
          %v1273 = vpop.f32.mrf.mxu0
          %v1274 = vadd.f32 %v1161, %v1273
          %v1275 = vpop.f32.mrf.mxu0
          %v1276 = vpop.f32.mrf.mxu0
          %v1277 = vadd.f32 %v1164, %v1276
          %v1278 = vpop.f32.mrf.mxu0
          %1279 = vmatprep.mubr.bf16.mxu0 0
          %1280 = vmatmul.mubr.bf16.gmra.mxu0 %v1007
          %v1281 = vpop.f32.mrf.mxu0
          %v1282 = vadd.f32 %v1169, %v1281
          %v1283 = vpop.f32.mrf.mxu0
          %v1284 = vpop.f32.mrf.mxu0
          %v1285 = vadd.f32 %v1172, %v1284
          %v1286 = vpop.f32.mrf.mxu0
          %1287 = vmatprep.mubr.bf16.mxu0 0
          %1288 = vmatmul.mubr.bf16.gmra.mxu0 %v1008
          %v1289 = vpop.f32.mrf.mxu0
          %v1290 = vadd.f32 %v1177, %v1289
          %v1291 = vpop.f32.mrf.mxu0
          %v1292 = vpop.f32.mrf.mxu0
          %v1293 = vadd.f32 %v1180, %v1292
          %v1294 = vpop.f32.mrf.mxu0
          %1295 = vmatprep.mubr.bf16.mxu0 0
          %1296 = vmatmul.mubr.bf16.gmra.mxu0 %v1009
          %v1297 = vpop.f32.mrf.mxu0
          %v1298 = vadd.f32 %v1185, %v1297
          %v1299 = vpop.f32.mrf.mxu0
          %v1300 = vpop.f32.mrf.mxu0
          %v1301 = vadd.f32 %v1188, %v1300
          %v1302 = vpop.f32.mrf.mxu0
          %1303 = vdwg.mxu0
          %v1304 = vld [vmem:[%s7] sm:$0x1]
          %v1306 = vlaneseq
          %v1307 = vshrl.u32 %v1306, 7
          %v1308 = vsub.s32 0, %v1307
          %v1309 = vrot.slane %v1304, %v1308
          %v1311 = vadd.f32 %v1274, %v1309
          %v1312 = vadd.f32 %v1277, %v1309
          %v1313 = vadd.f32 %v1282, %v1309
          %v1314 = vadd.f32 %v1285, %v1309
          %v1315 = vadd.f32 %v1290, %v1309
          %v1316 = vadd.f32 %v1293, %v1309
          %v1317 = vadd.f32 %v1298, %v1309
          %v1318 = vadd.f32 %v1301, %v1309
          %1319 = vst [vmem:[%s354] sm:$0xff] %v1311
          %1320 = vst [vmem:[%s354 + $0x8] sm:$0xff] %v1312
          %1321 = vst [vmem:[%s354 + $0x10] sm:$0xff] %v1313
          %1322 = vst [vmem:[%s354 + $0x18] sm:$0xff] %v1314
          %1323 = vst [vmem:[%s354 + $0x20] sm:$0xff] %v1315
          %1324 = vst [vmem:[%s354 + $0x28] sm:$0xff] %v1316
          %1325 = vst [vmem:[%s354 + $0x30] sm:$0xff] %v1317
          %1326 = vst [vmem:[%s354 + $0x38] sm:$0xff] %v1318
        $region72: #{gcn_encoder_forward.1} parent=51 // pred_fallthru
          _
        %s1327 = smul.u32 %s26, %s25
        %s1328 = smul.u32 8, %s1327
        %p1329 = scmp.lt.s32.totalorder %s1328, 7
        %s1330 = scalar_select %p1329, %s1328, 7
        %s1331 = smul.addr %s1330, 8
        %s1332 = scalar_lea.vmem %s8, %s1331
        // Predicated region
        $region73: #{gcn_encoder_forward.1} parent=51 // pred_check
          %p1333 = pneg %p226
        $region74: #{gcn_encoder_forward.1} parent=51 // pred_check_branch
          %1335 = sbr.rel (%p1333) target = $region76
        $region75: #{gcn_encoder_forward.1} parent=51 // pred_region
          %s1336 = smul.u32 %s26, %s25
          %s1337 = smul.u32 8, %s1336
        $region76: #{gcn_encoder_forward.1} parent=51 // pred_fallthru
          _
      $region52: #{gcn_encoder_forward.1} parent=5 // pred_fallthru
        _
      %p1338 = scmp.le.s32.totalorder 2, %s16
      // Predicated region
      $region77: #{gcn_encoder_forward.1} parent=5 // pred_check
        %p1339 = pneg %p1338
      $region78: #{gcn_encoder_forward.1} parent=5 // pred_check_branch
        %1341 = sbr.rel (%p1339) target = $region80
      $region79: #{gcn_encoder_forward.1} parent=5 // pred_region
        %s1342 = ssub.s32 %s16, 2
        // Predicated region
        $region81: #{gcn_encoder_forward.1} parent=79 // pred_check
          %p1343 = pneg %p232
        $region82: #{gcn_encoder_forward.1} parent=79 // pred_check_branch
          %1345 = sbr.rel (%p1343) target = $region84
        $region83: #{gcn_encoder_forward.1} parent=79 // pred_region
          %s1346 = smul.u32 %s28, %s27
          %s1347 = smul.u32 8, %s1346
          %p1348 = scmp.lt.s32.totalorder %s1347, 7
          %s1349 = scalar_select %p1348, %s1347, 7
          %s1350 = smul.addr %s1349, 8
          %s1351 = scalar_lea.vmem %s8, %s1350
        $region84: #{gcn_encoder_forward.1} parent=79 // pred_fallthru
          _
      $region80: #{gcn_encoder_forward.1} parent=5 // pred_fallthru
        _
    $region6: #{gcn_encoder_forward.1} parent=1 // loop_footer
      %s20 = sadd.s32 1, %s16
    $region7: #{gcn_encoder_forward.1} parent=1 // loop_footer_branch
      %15 = sbr.rel target = $region3
    $region8: #{gcn_encoder_forward.1} parent=1 // loop_exit
      _
    %1352 = vsyncpa [#allocation4], 1
    %s1353 = scalar_lea.sflag [#allocation4], 1
    %1354 = vsyncpa %s1353, 1
    %1355 = vsyncpa [#allocation6], 1

</llo_original>
